<compile_context>
chip_gen: v5e
topology: v5e:2x2
jax: 0.10.0
libtpu: 0.0.40
codegen_flags: <defaults>
</compile_context>

<pallas_src>
import functools

import jax
import jax.numpy as jnp
import numpy as np
from jax.experimental import pallas as pl
from jax.experimental.pallas import tpu as pltpu


def _round_up(x, m):
    return ((x + m - 1) // m) * m


def _dice_partial_kernel(yt_ref, ys_ref, top_ref, bot_ref, top_acc, bot_acc,
                         *, hw_valid, tn, needs_mask):
    j = pl.program_id(1)

    @pl.when(j == 0)
    def _():
        top_acc[...] = jnp.zeros_like(top_acc)
        bot_acc[...] = jnp.zeros_like(bot_acc)

    yt = yt_ref[...].astype(jnp.float32)   # (C, tn)
    ys = ys_ref[...].astype(jnp.float32)   # (C, tn)

    # get_segmentation: 1 where class prob equals the per-pixel max
    # (ties -> multiple ones, matching torch.where(eq(max(...))))
    mx = jnp.max(ys, axis=0, keepdims=True)        # (1, tn) sublane reduce
    seg = jnp.where(ys == mx, 1.0, 0.0)            # (C, tn)

    if needs_mask:
        # zero out padded lanes (yt is zero-padded, so masking seg suffices)
        lane = jax.lax.broadcasted_iota(jnp.int32, (1, tn), 1) + j * tn
        seg = seg * (lane < hw_valid).astype(jnp.float32)

    # pure VPU lane-wise accumulation; cross-lane reduce deferred to last step
    top_acc[...] += yt * seg
    bot_acc[...] += yt + seg

    @pl.when(j == pl.num_programs(1) - 1)
    def _():
        top_ref[...] = jnp.sum(top_acc[...], axis=-1, keepdims=True)[None]  # (1, C, 1)
        bot_ref[...] = jnp.sum(bot_acc[...], axis=-1, keepdims=True)[None]  # (1, C, 1)


def overlap_metrics_dice(y_true, y_seg, eps=1e-5):
    """Average foreground Dice == OverlapMetrics(type='average_foreground_dice')."""
    assert y_true.shape == y_seg.shape
    B, C, H, W = y_true.shape
    assert C >= 2, "average_foreground_dice needs at least one foreground class"
    HW = H * W

    # Free reshapes, native dtypes (no transpose, no forced f32 upcast).
    yt = y_true.reshape(B, C, HW)
    ys = y_seg.reshape(B, C, HW)

    # Lane-tile selection: as large as possible (<=32768) while keeping
    # double-buffered inputs + f32 intermediates + (C, tn) accumulators well
    # under the scoped VMEM limit on every chip (v5e/v6e/v7x safe).
    itemsize = max(jnp.dtype(yt.dtype).itemsize, jnp.dtype(ys.dtype).itemsize)
    budget = 20 * 1024 * 1024
    per_lane_bytes = 2 * 2 * C * itemsize + 8 * C * 4   # dbl-buf inputs + f32 temps/acc
    tn_cap = max(128, (budget // per_lane_bytes) // 128 * 128)
    tn_cap = min(tn_cap, 32768)

    hw128 = _round_up(HW, 128)
    n_tiles = -(-hw128 // tn_cap)                       # ceil
    tn = _round_up(-(-HW // n_tiles), 128)              # minimal 128-multiple tile
    hw_pad = tn * n_tiles
    needs_mask = hw_pad != HW

    if needs_mask:
        pad = [(0, 0), (0, 0), (0, hw_pad - HW)]
        yt = jnp.pad(yt, pad)
        ys = jnp.pad(ys, pad)

    kernel = functools.partial(_dice_partial_kernel,
                               hw_valid=HW, tn=tn, needs_mask=needs_mask)

    top, bot = pl.pallas_call(
        kernel,
        out_shape=(jax.ShapeDtypeStruct((B, C, 1), jnp.float32),
                   jax.ShapeDtypeStruct((B, C, 1), jnp.float32)),
        grid_spec=pltpu.PrefetchScalarGridSpec(
            num_scalar_prefetch=0,
            grid=(B, n_tiles),
            in_specs=[
                pl.BlockSpec((pl.Squeezed(), C, tn), lambda b, j: (b, 0, j)),
                pl.BlockSpec((pl.Squeezed(), C, tn), lambda b, j: (b, 0, j)),
            ],
            out_specs=[
                pl.BlockSpec((1, C, 1), lambda b, j: (b, 0, 0)),
                pl.BlockSpec((1, C, 1), lambda b, j: (b, 0, 0)),
            ],
            scratch_shapes=[
                pltpu.VMEM((C, tn), jnp.float32),
                pltpu.VMEM((C, tn), jnp.float32),
            ],
        ),
        compiler_params=pltpu.CompilerParams(
            dimension_semantics=("parallel", "arbitrary"),
            vmem_limit_bytes=32 * 1024 * 1024,
        ),
    )(yt, ys)

    # Tiny epilogue in plain JAX on (B, C) partials.
    top_c = 2.0 * jnp.sum(top[:, :, 0], axis=0)   # (C,)
    bot_c = jnp.sum(bot[:, :, 0], axis=0)         # (C,)
    dice_c = top_c / (bot_c + eps)
    return jnp.sum(dice_c[1:]) / jnp.float32(C - 1)


def _reference_dice(y_true, y_seg, eps=1e-5):
    """Pure-JAX reference mirroring the PyTorch module."""
    mx = jnp.max(y_seg, axis=1, keepdims=True)
    seg = jnp.where(y_seg == mx, 1.0, 0.0)
    n_class = y_seg.shape[1]
    dice = 0.0
    for i in range(1, n_class):
        top = 2.0 * jnp.sum(y_true[:, i] * seg[:, i])
        bottom = jnp.sum(y_true[:, i] + seg[:, i])
        dice += top / (bottom + eps)
    return dice / jnp.float32(n_class - 1)


if __name__ == "__main__":
    key = jax.random.PRNGKey(0)
    B, C, H, W = 2, 4, 16, 16

    k1, k2 = jax.random.split(key)
    # y_true: one-hot ground-truth labels, NCHW
    labels = jax.random.randint(k1, (B, H, W), 0, C)
    y_true = jax.nn.one_hot(labels, C, axis=1).astype(jnp.float32)      # [B, C, H, W]
    # y_seg: predicted probability maps, NCHW
    logits = jax.random.normal(k2, (B, C, H, W), dtype=jnp.float32)
    y_seg = jax.nn.softmax(logits, axis=1)                              # [B, C, H, W]

    metric = overlap_metrics_dice(y_true, y_seg, eps=1e-5)
    metric = jax.block_until_ready(metric)

    ref = jax.block_until_ready(_reference_dice(y_true, y_seg, eps=1e-5))
    np.testing.assert_allclose(np.asarray(metric), np.asarray(ref), rtol=1e-5, atol=1e-6)

    # also exercise the padded / multi-tile path on an unaligned spatial size
    k3, k4 = jax.random.split(k2)
    B2, C2, H2, W2 = 2, 4, 15, 17
    labels2 = jax.random.randint(k3, (B2, H2, W2), 0, C2)
    y_true2 = jax.nn.one_hot(labels2, C2, axis=1).astype(jnp.float32)
    y_seg2 = jax.nn.softmax(jax.random.normal(k4, (B2, C2, H2, W2), jnp.float32), axis=1)
    m2 = jax.block_until_ready(overlap_metrics_dice(y_true2, y_seg2))
    r2 = jax.block_until_ready(_reference_dice(y_true2, y_seg2))
    np.testing.assert_allclose(np.asarray(m2), np.asarray(r2), rtol=1e-5, atol=1e-6)

    print("KERNEL_OK")
</pallas_src>

<mosaic_0001>
module attributes {stable_mosaic.version = 11 : i64} {
  func.func @_dice_partial_kernel(%arg0: i32, %arg1: i32, %arg2: memref<1x4x256xf32, #tpu.memory_space<vmem>>, %arg3: memref<1x4x256xf32, #tpu.memory_space<vmem>>, %arg4: memref<1x4x1xf32, #tpu.memory_space<vmem>>, %arg5: memref<1x4x1xf32, #tpu.memory_space<vmem>>, %arg6: memref<4x256xf32, #tpu.memory_space<vmem>>, %arg7: memref<4x256xf32, #tpu.memory_space<vmem>>) attributes {dimension_semantics = [#tpu.dimension_semantics<parallel>, #tpu.dimension_semantics<arbitrary>], iteration_bounds = array<i64: 2, 1>, scalar_prefetch = 0 : i64, scratch_operands = 2 : i64, tpu.core_type = #tpu.core_type<tc>, window_params = [{transform_indices = @transform_0, window_bounds = array<i64: 1, 4, 256>}, {transform_indices = @transform_1, window_bounds = array<i64: 1, 4, 256>}, {transform_indices = @transform_2, window_bounds = array<i64: 1, 4, 1>}, {transform_indices = @transform_3, window_bounds = array<i64: 1, 4, 1>}]} {
    %c0_i32 = arith.constant 0 : i32
    %0 = arith.cmpi eq, %arg1, %c0_i32 : i32
    %1 = arith.extui %0 : i1 to i32
    %c0_i32_0 = arith.constant 0 : i32
    %2 = arith.cmpi ne, %1, %c0_i32_0 : i32
    scf.if %2 {
      %cst_18 = arith.constant 0.000000e+00 : f32
      %25 = vector.broadcast %cst_18 : f32 to vector<4x256xf32>
      %c0_19 = arith.constant 0 : index
      %c0_20 = arith.constant 0 : index
      %26 = vector.load %arg6[%c0_19, %c0_20] : memref<4x256xf32, #tpu.memory_space<vmem>>, vector<4x256xf32>
      tpu.vector_store %arg6[%c0_19, %c0_20], %25 {strides = array<i32>} : memref<4x256xf32, #tpu.memory_space<vmem>>, vector<4x256xf32>,
      %cst_21 = arith.constant 0.000000e+00 : f32
      %27 = vector.broadcast %cst_21 : f32 to vector<4x256xf32>
      %c0_22 = arith.constant 0 : index
      %c0_23 = arith.constant 0 : index
      %28 = vector.load %arg7[%c0_22, %c0_23] : memref<4x256xf32, #tpu.memory_space<vmem>>, vector<4x256xf32>
      tpu.vector_store %arg7[%c0_22, %c0_23], %27 {strides = array<i32>} : memref<4x256xf32, #tpu.memory_space<vmem>>, vector<4x256xf32>,
    } else {
    }
    %c0 = arith.constant 0 : index
    %c0_1 = arith.constant 0 : index
    %c0_2 = arith.constant 0 : index
    %3 = vector.load %arg2[%c0, %c0_1, %c0_2] : memref<1x4x256xf32, #tpu.memory_space<vmem>>, vector<1x4x256xf32>
    %4 = vector.shape_cast %3 : vector<1x4x256xf32> to vector<4x256xf32>
    %c0_3 = arith.constant 0 : index
    %c0_4 = arith.constant 0 : index
    %c0_5 = arith.constant 0 : index
    %5 = vector.load %arg3[%c0_3, %c0_4, %c0_5] : memref<1x4x256xf32, #tpu.memory_space<vmem>>, vector<1x4x256xf32>
    %6 = vector.shape_cast %5 : vector<1x4x256xf32> to vector<4x256xf32>
    %cst = arith.constant dense<0xFF800000> : vector<256xf32>
    %7 = vector.multi_reduction <maximumf>, %6, %cst [0] : vector<4x256xf32> to vector<256xf32>
    %8 = vector.shape_cast %7 : vector<256xf32> to vector<1x256xf32>
    %9 = vector.broadcast %8 : vector<1x256xf32> to vector<4x256xf32>
    %10 = arith.cmpf oeq, %6, %9 : vector<4x256xf32>
    %cst_6 = arith.constant 1.000000e+00 : f32
    %cst_7 = arith.constant 0.000000e+00 : f32
    %11 = vector.broadcast %cst_6 : f32 to vector<4x256xf32>
    %12 = vector.broadcast %cst_7 : f32 to vector<4x256xf32>
    %13 = arith.select %10, %11, %12 : vector<4x256xi1>, vector<4x256xf32>
    %c0_8 = arith.constant 0 : index
    %c0_9 = arith.constant 0 : index
    %14 = vector.load %arg6[%c0_8, %c0_9] : memref<4x256xf32, #tpu.memory_space<vmem>>, vector<4x256xf32>
    %15 = arith.mulf %4, %13 : vector<4x256xf32>
    %16 = arith.addf %14, %15 : vector<4x256xf32>
    %c0_10 = arith.constant 0 : index
    %c0_11 = arith.constant 0 : index
    %17 = vector.load %arg6[%c0_10, %c0_11] : memref<4x256xf32, #tpu.memory_space<vmem>>, vector<4x256xf32>
    tpu.vector_store %arg6[%c0_10, %c0_11], %16 {strides = array<i32>} : memref<4x256xf32, #tpu.memory_space<vmem>>, vector<4x256xf32>,
    %c0_12 = arith.constant 0 : index
    %c0_13 = arith.constant 0 : index
    %18 = vector.load %arg7[%c0_12, %c0_13] : memref<4x256xf32, #tpu.memory_space<vmem>>, vector<4x256xf32>
    %19 = arith.addf %4, %13 : vector<4x256xf32>
    %20 = arith.addf %18, %19 : vector<4x256xf32>
    %c0_14 = arith.constant 0 : index
    %c0_15 = arith.constant 0 : index
    %21 = vector.load %arg7[%c0_14, %c0_15] : memref<4x256xf32, #tpu.memory_space<vmem>>, vector<4x256xf32>
    tpu.vector_store %arg7[%c0_14, %c0_15], %20 {strides = array<i32>} : memref<4x256xf32, #tpu.memory_space<vmem>>, vector<4x256xf32>,
    %c0_i32_16 = arith.constant 0 : i32
    %22 = arith.cmpi eq, %arg1, %c0_i32_16 : i32
    %23 = arith.extui %22 : i1 to i32
    %c0_i32_17 = arith.constant 0 : i32
    %24 = arith.cmpi ne, %23, %c0_i32_17 : i32
    scf.if %24 {
      %c0_18 = arith.constant 0 : index
      %c0_19 = arith.constant 0 : index
      %25 = vector.load %arg6[%c0_18, %c0_19] : memref<4x256xf32, #tpu.memory_space<vmem>>, vector<4x256xf32>
      %cst_20 = arith.constant dense<0.000000e+00> : vector<4xf32>
      %26 = vector.multi_reduction <add>, %25, %cst_20 [1] : vector<4x256xf32> to vector<4xf32>
      %27 = vector.shape_cast %26 : vector<4xf32> to vector<4x1xf32>
      %28 = vector.shape_cast %27 : vector<4x1xf32> to vector<1x4x1xf32>
      %c0_21 = arith.constant 0 : index
      %c0_22 = arith.constant 0 : index
      %c0_23 = arith.constant 0 : index
      %29 = vector.load %arg4[%c0_21, %c0_22, %c0_23] : memref<1x4x1xf32, #tpu.memory_space<vmem>>, vector<1x4x1xf32>
      tpu.vector_store %arg4[%c0_21, %c0_22, %c0_23], %28 {strides = array<i32>} : memref<1x4x1xf32, #tpu.memory_space<vmem>>, vector<1x4x1xf32>,
      %c0_24 = arith.constant 0 : index
      %c0_25 = arith.constant 0 : index
      %30 = vector.load %arg7[%c0_24, %c0_25] : memref<4x256xf32, #tpu.memory_space<vmem>>, vector<4x256xf32>
      %cst_26 = arith.constant dense<0.000000e+00> : vector<4xf32>
      %31 = vector.multi_reduction <add>, %30, %cst_26 [1] : vector<4x256xf32> to vector<4xf32>
      %32 = vector.shape_cast %31 : vector<4xf32> to vector<4x1xf32>
      %33 = vector.shape_cast %32 : vector<4x1xf32> to vector<1x4x1xf32>
      %c0_27 = arith.constant 0 : index
      %c0_28 = arith.constant 0 : index
      %c0_29 = arith.constant 0 : index
      %34 = vector.load %arg5[%c0_27, %c0_28, %c0_29] : memref<1x4x1xf32, #tpu.memory_space<vmem>>, vector<1x4x1xf32>
      tpu.vector_store %arg5[%c0_27, %c0_28, %c0_29], %33 {strides = array<i32>} : memref<1x4x1xf32, #tpu.memory_space<vmem>>, vector<1x4x1xf32>,
    } else {
    }
    return
  }
  func.func @transform_0(%arg0: i32, %arg1: i32) -> (i32, i32, i32) {
    %c0_i32 = arith.constant 0 : i32
    %c0_i32_0 = arith.constant 0 : i32
    return %arg0, %c0_i32, %arg1 : i32, i32, i32
  }
  func.func @transform_1(%arg0: i32, %arg1: i32) -> (i32, i32, i32) {
    %c0_i32 = arith.constant 0 : i32
    %c0_i32_0 = arith.constant 0 : i32
    return %arg0, %c0_i32, %arg1 : i32, i32, i32
  }
  func.func @transform_2(%arg0: i32, %arg1: i32) -> (i32, i32, i32) {
    %c0_i32 = arith.constant 0 : i32
    %c0_i32_0 = arith.constant 0 : i32
    %c0_i32_1 = arith.constant 0 : i32
    return %arg0, %c0_i32, %c0_i32_0 : i32, i32, i32
  }
  func.func @transform_3(%arg0: i32, %arg1: i32) -> (i32, i32, i32) {
    %c0_i32 = arith.constant 0 : i32
    %c0_i32_0 = arith.constant 0 : i32
    %c0_i32_1 = arith.constant 0 : i32
    return %arg0, %c0_i32, %c0_i32_0 : i32, i32, i32
  }
}

</mosaic_0001>

<llo_original>
// kernel: tpu_custom_call.1
$region0: #{tpu_custom_call.1}
  #allocation0 [shape = 'u32[]', space=smem, size = 0x4, offset = 0x4, fixed_abs, tag = 'smem constant byte address 0x4 - core index']
  #allocation1 [shape = 'u32[72,128]{1,0:T(1,128)}', space=vmem, size = 0x9000, scoped, tag = 'internal scratch']
  #allocation2 [shape = 'f32[4,256]{1,0:T(4,128)}', space=vmem, size = 0x1000, scoped, tag = 'scratch operand']
  #allocation3 [shape = 'f32[4,256]{1,0:T(4,128)}', space=vmem, size = 0x1000, scoped, tag = 'scratch operand']
  %s0 = inlined_call_operand.hbm [shape: f32[2,4,256], index: 0, kind: input, shape index: {}]
  %s1 = inlined_call_operand.hbm [shape: f32[2,4,256], index: 1, kind: input, shape index: {}]
  %s2 = inlined_call_operand.vmem [shape: f32[2,4,1], index: 2, kind: output, shape index: {0}]
  %s3 = inlined_call_operand.vmem [shape: f32[2,4,1], index: 3, kind: output, shape index: {1}]
  %4 = xla_tuple %s2, %s3
  %s5 = sld [smem:[#allocation0]]
  $region65: #{tpu_custom_call.1} parent=0
    _
  %s7 = ssub.s32 1, %s5
  %s8 = scalar_select 0, %s7, %s5
  $region1: #{tpu_custom_call.1} parent=0
    #allocation4 [shape = 'u8[8192]{0}', space=vmem, size = 0x2000, scoped, tag = 'input window, operand 0']
    #allocation5 [shape = 's32[2]{0}', space=sflag, size = 0x8, scoped, tag = 'scoped memory for tpu_custom_call.1']
    #allocation6 [shape = 'u8[8192]{0}', space=vmem, size = 0x2000, scoped, tag = 'input window, operand 1']
    #allocation7 [shape = 's32[2]{0}', space=sflag, size = 0x8, scoped, tag = 'scoped memory for tpu_custom_call.1']
    %9 = vsyncpa [#allocation5], 0
    %s10 = scalar_lea.sflag [#allocation5], 1
    %11 = vsyncpa %s10, 0
    %12 = vsyncpa [#allocation7], 0
    %s13 = scalar_lea.sflag [#allocation7], 1
    %14 = vsyncpa %s13, 0
    loop: start=0, step=1, limit=4
    $region2: #{tpu_custom_call.1} parent=1 // loop_pre_header
      _
    $region3: #{tpu_custom_call.1} parent=1 // loop_header
      %s16 = sphi 0, %s20
      %p17 = scmp.ge.s32.totalorder %s16, 4
      %s23 = sphi 0, %s35
      %s24 = sphi 0, %s31
      %s25 = sphi 0, %s23
      %s26 = sphi 0, %s24
      %s27 = sphi 0, %s25
      %s28 = sphi 0, %s26
      %s40 = sphi 0, %s42
      %s43 = sphi 0, %s40
      %s44 = sphi 0, %s43
      %s60 = sphi 0, %s44
      %s68 = sphi 0, %s70
      %s71 = sphi 0, %s68
      %s72 = sphi 0, %s71
      %s88 = sphi 0, %s72
      %s94 = sphi 0, %s96
      %s97 = sphi 0, %s94
      %s98 = sphi 0, %s97
      %s114 = sphi 0, %s98
      %s120 = sphi 0, %s122
      %s123 = sphi 0, %s120
      %s124 = sphi 0, %s123
      %s140 = sphi 0, %s124
    $region4: #{tpu_custom_call.1} parent=1 // loop_header_branch
      %19 = sbr.rel (%p17) target = $region8
    $region5: #{tpu_custom_call.1} parent=1 // loop_body
      %s21 = ssub.s32 %s16, 1
      %s22 = ssub.s32 %s16, 2
      %s29 = sadd.s32 1, %s24
      %p30 = scmp.ge.s32.totalorder %s29, 1
      %s31 = scalar_select %p30, 0, %s29
      %s32 = sadd.s32 1, %s23
      %s33 = scalar_select %p30, %s32, %s23
      %p34 = scmp.ge.s32.totalorder %s33, 2
      %s35 = scalar_select %p34, 0, %s33
      %s36 = ssub.s32 %s23, %s35
      %s37 = ssub.s32 %s24, %s31
      %s38 = sor.u32 %s36, %s37
      %p39 = scmp.eq.s32.totalorder %s38, 0
      %s41 = sadd.s32 %s40, 1
      %s42 = scalar_select %p39, %s40, %s41
      %p45 = pneg %p39
      %p46 = scmp.eq.s32.totalorder %s16, 1
      %p47 = por %p45, %p46
      %p48 = scmp.ne.s32.totalorder %s40, %s43
      %p49 = scmp.eq.s32.totalorder %s16, 0
      %p50 = por %p48, %p49
      %p51 = scmp.ne.s32.totalorder %s40, %s43
      %p52 = scmp.eq.s32.totalorder %s21, 1
      %p53 = por %p51, %p52
      %p54 = scmp.ne.s32.totalorder %s43, %s44
      %p55 = scmp.eq.s32.totalorder %s21, 0
      %p56 = por %p54, %p55
      %p57 = scmp.ne.s32.totalorder %s43, %s44
      %p58 = scmp.eq.s32.totalorder %s22, 1
      %p59 = por %p57, %p58
      %p61 = scmp.ne.s32.totalorder %s44, %s60
      %p62 = scmp.eq.s32.totalorder %s22, 0
      %p63 = por %p61, %p62
      %s64 = ssub.s32 %s23, %s35
      %s65 = ssub.s32 %s24, %s31
      %s66 = sor.u32 %s64, %s65
      %p67 = scmp.eq.s32.totalorder %s66, 0
      %s69 = sadd.s32 %s68, 1
      %s70 = scalar_select %p67, %s68, %s69
      %p73 = pneg %p67
      %p74 = scmp.eq.s32.totalorder %s16, 1
      %p75 = por %p73, %p74
      %p76 = scmp.ne.s32.totalorder %s68, %s71
      %p77 = scmp.eq.s32.totalorder %s16, 0
      %p78 = por %p76, %p77
      %p79 = scmp.ne.s32.totalorder %s68, %s71
      %p80 = scmp.eq.s32.totalorder %s21, 1
      %p81 = por %p79, %p80
      %p82 = scmp.ne.s32.totalorder %s71, %s72
      %p83 = scmp.eq.s32.totalorder %s21, 0
      %p84 = por %p82, %p83
      %p85 = scmp.ne.s32.totalorder %s71, %s72
      %p86 = scmp.eq.s32.totalorder %s22, 1
      %p87 = por %p85, %p86
      %p89 = scmp.ne.s32.totalorder %s72, %s88
      %p90 = scmp.eq.s32.totalorder %s22, 0
      %p91 = por %p89, %p90
      %s92 = ssub.s32 %s23, %s35
      %p93 = scmp.eq.s32.totalorder %s92, 0
      %s95 = sadd.s32 %s94, 1
      %s96 = scalar_select %p93, %s94, %s95
      %p99 = pneg %p93
      %p100 = scmp.eq.s32.totalorder %s16, 1
      %p101 = por %p99, %p100
      %p102 = scmp.ne.s32.totalorder %s94, %s97
      %p103 = scmp.eq.s32.totalorder %s16, 0
      %p104 = por %p102, %p103
      %p105 = scmp.ne.s32.totalorder %s94, %s97
      %p106 = scmp.eq.s32.totalorder %s21, 1
      %p107 = por %p105, %p106
      %p108 = scmp.ne.s32.totalorder %s97, %s98
      %p109 = scmp.eq.s32.totalorder %s21, 0
      %p110 = por %p108, %p109
      %p111 = scmp.ne.s32.totalorder %s97, %s98
      %p112 = scmp.eq.s32.totalorder %s22, 1
      %p113 = por %p111, %p112
      %p115 = scmp.ne.s32.totalorder %s98, %s114
      %p116 = scmp.eq.s32.totalorder %s22, 0
      %p117 = por %p115, %p116
      %s118 = ssub.s32 %s23, %s35
      %p119 = scmp.eq.s32.totalorder %s118, 0
      %s121 = sadd.s32 %s120, 1
      %s122 = scalar_select %p119, %s120, %s121
      %p125 = pneg %p119
      %p126 = scmp.eq.s32.totalorder %s16, 1
      %p127 = por %p125, %p126
      %p128 = scmp.ne.s32.totalorder %s120, %s123
      %p129 = scmp.eq.s32.totalorder %s16, 0
      %p130 = por %p128, %p129
      %p131 = scmp.ne.s32.totalorder %s120, %s123
      %p132 = scmp.eq.s32.totalorder %s21, 1
      %p133 = por %p131, %p132
      %p134 = scmp.ne.s32.totalorder %s123, %s124
      %p135 = scmp.eq.s32.totalorder %s21, 0
      %p136 = por %p134, %p135
      %p137 = scmp.ne.s32.totalorder %s123, %s124
      %p138 = scmp.eq.s32.totalorder %s22, 1
      %p139 = por %p137, %p138
      %p141 = scmp.ne.s32.totalorder %s124, %s140
      %p142 = scmp.eq.s32.totalorder %s22, 0
      %p143 = por %p141, %p142
      %p144 = scmp.le.s32.totalorder 1, %s16
      %p145 = scmp.lt.s32.totalorder %s16, 3
      %p146 = pnand %p144, %p145
      %p147 = pneg %p146
      // Predicated region
      $region9: #{tpu_custom_call.1} parent=5 // pred_check
        _
      $region10: #{tpu_custom_call.1} parent=5 // pred_check_branch
        %149 = sbr.rel (%p146) target = $region12
      $region11: #{tpu_custom_call.1} parent=5 // pred_region
        %s150 = ssub.s32 %s16, 1
      $region12: #{tpu_custom_call.1} parent=5 // pred_fallthru
        _
      %p151 = scmp.lt.s32.totalorder %s16, 2
      // Predicated region
      $region13: #{tpu_custom_call.1} parent=5 // pred_check
        %p152 = pneg %p151
      $region14: #{tpu_custom_call.1} parent=5 // pred_check_branch
        %154 = sbr.rel (%p152) target = $region16
      $region15: #{tpu_custom_call.1} parent=5 // pred_region
        // Predicated region
        $region17: #{tpu_custom_call.1} parent=15 // pred_check
          %p155 = pneg %p50
        $region18: #{tpu_custom_call.1} parent=15 // pred_check_branch
          %157 = sbr.rel (%p155) target = $region20
        $region19: #{tpu_custom_call.1} parent=15 // pred_region
          %s158 = sand.u32 %s40, 1
          %s159 = scalar_lea.sflag [#allocation5], %s158
          %s160 = sand.u32 %s40, 1
          %s161 = smul.addr %s160, 8
          %s162 = scalar_lea.vmem [#allocation4], %s161
          %s163 = smul.u32 2, %s24
          %165 = vsyncadd %s159, 0
          %s166 = smul.addr %s23, 2
          %s167 = sadd.s32 %s163, %s166
          %s168 = smul.addr %s167, 4
          %s169 = scalar_lea.hbm %s0, %s168
          %s171 = sshll.u32 %s169, 4
          %s172 = int_to_ptr.hbm [resolvable:$true] %s171
          %s173 = sshll.u32 %s162, 4
          %s174 = int_to_ptr.vmem [resolvable:$true] %s173
          %176 = dma.hbm_to_vmem [thread:$0]  %s172, 128, %s174, %s159
        $region20: #{tpu_custom_call.1} parent=15 // pred_fallthru
          _
        // Predicated region
        $region21: #{tpu_custom_call.1} parent=15 // pred_check
          %p177 = pneg %p78
        $region22: #{tpu_custom_call.1} parent=15 // pred_check_branch
          %179 = sbr.rel (%p177) target = $region24
        $region23: #{tpu_custom_call.1} parent=15 // pred_region
          %s180 = sand.u32 %s68, 1
          %s181 = scalar_lea.sflag [#allocation7], %s180
          %s182 = sand.u32 %s68, 1
          %s183 = smul.addr %s182, 8
          %s184 = scalar_lea.vmem [#allocation6], %s183
          %s185 = smul.u32 2, %s24
          %187 = vsyncadd %s181, 0
          %s188 = smul.addr %s23, 2
          %s189 = sadd.s32 %s185, %s188
          %s190 = smul.addr %s189, 4
          %s191 = scalar_lea.hbm %s1, %s190
          %s193 = sshll.u32 %s191, 4
          %s194 = int_to_ptr.hbm [resolvable:$true] %s193
          %s195 = sshll.u32 %s184, 4
          %s196 = int_to_ptr.vmem [resolvable:$true] %s195
          %198 = dma.hbm_to_vmem [thread:$0]  %s194, 128, %s196, %s181
        $region24: #{tpu_custom_call.1} parent=15 // pred_fallthru
          _
      $region16: #{tpu_custom_call.1} parent=5 // pred_fallthru
        _
      %p199 = scmp.le.s32.totalorder 1, %s16
      %p200 = scmp.lt.s32.totalorder %s16, 3
      %p201 = pnand %p199, %p200
      %p202 = pneg %p201
      // Predicated region
      $region25: #{tpu_custom_call.1} parent=5 // pred_check
        _
      $region26: #{tpu_custom_call.1} parent=5 // pred_check_branch
        %204 = sbr.rel (%p201) target = $region28
      $region27: #{tpu_custom_call.1} parent=5 // pred_region
        %s205 = ssub.s32 %s16, 1
        %s206 = sand.u32 %s43, 1
        %s207 = scalar_lea.sflag [#allocation5], %s206
        %s208 = sand.u32 %s43, 1
        %s209 = smul.addr %s208, 8
        %s210 = scalar_lea.vmem [#allocation4], %s209
        // Predicated region
        $region29: #{tpu_custom_call.1} parent=27 // pred_check
          %p211 = pneg %p56
        $region30: #{tpu_custom_call.1} parent=27 // pred_check_branch
          %213 = sbr.rel (%p211) target = $region32
        $region31: #{tpu_custom_call.1} parent=27 // pred_region
          %215 = dma.done %s207, 128
        $region32: #{tpu_custom_call.1} parent=27 // pred_fallthru
          _
        %s216 = sand.u32 %s71, 1
        %s217 = scalar_lea.sflag [#allocation7], %s216
        %s218 = sand.u32 %s71, 1
        %s219 = smul.addr %s218, 8
        %s220 = scalar_lea.vmem [#allocation6], %s219
        // Predicated region
        $region33: #{tpu_custom_call.1} parent=27 // pred_check
          %p221 = pneg %p84
        $region34: #{tpu_custom_call.1} parent=27 // pred_check_branch
          %223 = sbr.rel (%p221) target = $region36
        $region35: #{tpu_custom_call.1} parent=27 // pred_region
          %225 = dma.done %s217, 128
        $region36: #{tpu_custom_call.1} parent=27 // pred_fallthru
          _
        %s226 = sand.u32 %s43, 1
        %s227 = scalar_lea.sflag [#allocation5], %s226
        %s228 = sand.u32 %s43, 1
        %s229 = smul.addr %s228, 8
        %s230 = scalar_lea.vmem [#allocation4], %s229
        %p231 = pneg %p56
        %p232 = pneg %p53
        %s233 = sand.u32 %s71, 1
        %s234 = scalar_lea.sflag [#allocation7], %s233
        %s235 = sand.u32 %s71, 1
        %s236 = smul.addr %s235, 8
        %s237 = scalar_lea.vmem [#allocation6], %s236
        %p238 = pneg %p84
        %p239 = pneg %p81
        %p240 = pneg %p110
        %p241 = pneg %p107
        %p242 = scmp.lt.s32.totalorder %s25, 1
        %s243 = scalar_select %p242, %s25, 1
        %s244 = smul.addr %s243, 4
        %s245 = scalar_lea.vmem %s2, %s244
        %p246 = pneg %p136
        %p247 = pneg %p133
        %p248 = scmp.lt.s32.totalorder %s25, 1
        %s249 = scalar_select %p248, %s25, 1
        %s250 = smul.addr %s249, 4
        %s251 = scalar_lea.vmem %s3, %s250
        %s252 = smul.u32 2, %s26
        %s253 = smul.u32 2, %s26
        %p254 = scmp.lt.s32.totalorder %s25, 1
        %s255 = scalar_select %p254, %s25, 1
        %s256 = smul.addr %s255, 4
        %s257 = scalar_lea.vmem %s2, %s256
        %p258 = scmp.lt.s32.totalorder %s25, 1
        %s259 = scalar_select %p258, %s25, 1
        %s260 = smul.addr %s259, 4
        %s261 = scalar_lea.vmem %s3, %s260
        %p262 = scmp.eq.s32.totalorder %s26, 0
        // Predicated region
        $region37: #{tpu_custom_call.1} parent=27 // pred_check
          %p263 = pneg %p262
        $region38: #{tpu_custom_call.1} parent=27 // pred_check_branch
          %265 = sbr.rel (%p263) target = $region40
        $region39: #{tpu_custom_call.1} parent=27 // pred_region
          %266 = vst [vmem:[#allocation2] sm:$0xff] 0.0
          %267 = vst [vmem:[#allocation3] sm:$0xff] 0.0
        $region40: #{tpu_custom_call.1} parent=27 // pred_fallthru
          _
        %v268 = vld [vmem:[%s210] sm:$0xff]
        %v269 = vld [vmem:[%s220] sm:$0xff]
        %271 = vst [vmem:[#allocation1] ss:$2 sm:$0xff] %v269
        %v272 = vld.sshfl [vmem:[#allocation1] sm:$0xff pattern:$0x75316420]
        %v273 = vld.sshfl [vmem:[#allocation1 + $0x8] sm:$0xff pattern:$0x75316420]
        %vm276 = vcmask 1043456
        %v277 = vsel %vm276, %v272, -inf
        %v278 = vrot.slane %v277, 4
        %v279 = vmax.f32 %v277, %v278
        %v280 = vrot.slane %v279, 2
        %v281 = vmax.f32 %v279, %v280
        %v282 = vrot.slane %v281, 1
        %v283 = vmax.f32 %v281, %v282
        %v284 = vsel %vm276, %v273, -inf
        %v285 = vrot.slane %v284, 4
        %v286 = vmax.f32 %v284, %v285
        %v287 = vrot.slane %v286, 2
        %v288 = vmax.f32 %v286, %v287
        %v289 = vrot.slane %v288, 1
        %v290 = vmax.f32 %v288, %v289
        %v293 = vrot.slane %v290, 4
        %v294 = vsel %vm276, %v283, %v293
        %vm296 = vcmp.eq.f32.partialorder %v269, %v294
        %v297 = vsel %vm296, 1.0, 0.0
        %v298 = vld [vmem:[#allocation2] sm:$0xff]
        %v299 = vmul.f32 %v268, %v297
        %v300 = vadd.f32 %v298, %v299
        %301 = vst [vmem:[#allocation2] sm:$0xff] %v300
        %v302 = vld [vmem:[#allocation3] sm:$0xff]
        %v303 = vadd.f32 %v268, %v297
        %v304 = vadd.f32 %v302, %v303
        %305 = vst [vmem:[#allocation3] sm:$0xff] %v304
        // Predicated region
        $region41: #{tpu_custom_call.1} parent=27 // pred_check
          %p306 = pneg %p262
        $region42: #{tpu_custom_call.1} parent=27 // pred_check_branch
          %308 = sbr.rel (%p306) target = $region44
        $region43: #{tpu_custom_call.1} parent=27 // pred_region
          %v309 = vld [vmem:[#allocation2] sm:$0xff]
          %311 = vst [vmem:[#allocation1] ss:$2 sm:$0xff] %v309
          %v312 = vld.sshfl [vmem:[#allocation1] sm:$0xff pattern:$0x75316420]
          %v313 = vld.sshfl [vmem:[#allocation1 + $0x8] sm:$0xff pattern:$0x75316420]
          %v316 = vsel %vm276, %v312, 0.0
          %v317 = vsel %vm276, %v313, 0.0
          %v318 = vadd.f32 %v316, %v317
          %319 = vadd.xlane.f32.xlu0 %v318
          %v320 = vpop.xlane.xlu0 %319
          %vm321 = vcmask 3072
          %322 = vst.msk [vmem:[%s257] sm:$0xf] %vm321, %v320
          %v323 = vld [vmem:[#allocation3] sm:$0xff]
          %325 = vst [vmem:[#allocation1] ss:$2 sm:$0xff] %v323
          %v326 = vld.sshfl [vmem:[#allocation1] sm:$0xff pattern:$0x75316420]
          %v327 = vld.sshfl [vmem:[#allocation1 + $0x8] sm:$0xff pattern:$0x75316420]
          %v330 = vsel %vm276, %v326, 0.0
          %v331 = vsel %vm276, %v327, 0.0
          %v332 = vadd.f32 %v330, %v331
          %333 = vadd.xlane.f32.xlu0 %v332
          %v334 = vpop.xlane.xlu0 %333
          %335 = vst.msk [vmem:[%s261] sm:$0xf] %vm321, %v334
        $region44: #{tpu_custom_call.1} parent=27 // pred_fallthru
          _
        %p336 = scmp.lt.s32.totalorder %s25, 1
        %s337 = scalar_select %p336, %s25, 1
        %s338 = smul.addr %s337, 4
        %s339 = scalar_lea.vmem %s2, %s338
        %p340 = scmp.lt.s32.totalorder %s25, 1
        %s341 = scalar_select %p340, %s25, 1
        %s342 = smul.addr %s341, 4
        %s343 = scalar_lea.vmem %s3, %s342
        // Predicated region
        $region45: #{tpu_custom_call.1} parent=27 // pred_check
          %p344 = pneg %p107
        $region46: #{tpu_custom_call.1} parent=27 // pred_check_branch
          %346 = sbr.rel (%p344) target = $region48
        $region47: #{tpu_custom_call.1} parent=27 // pred_region
          _
        $region48: #{tpu_custom_call.1} parent=27 // pred_fallthru
          _
        // Predicated region
        $region49: #{tpu_custom_call.1} parent=27 // pred_check
          %p347 = pneg %p133
        $region50: #{tpu_custom_call.1} parent=27 // pred_check_branch
          %349 = sbr.rel (%p347) target = $region52
        $region51: #{tpu_custom_call.1} parent=27 // pred_region
          _
        $region52: #{tpu_custom_call.1} parent=27 // pred_fallthru
          _
      $region28: #{tpu_custom_call.1} parent=5 // pred_fallthru
        _
      %p350 = scmp.le.s32.totalorder 2, %s16
      // Predicated region
      $region53: #{tpu_custom_call.1} parent=5 // pred_check
        %p351 = pneg %p350
      $region54: #{tpu_custom_call.1} parent=5 // pred_check_branch
        %353 = sbr.rel (%p351) target = $region56
      $region55: #{tpu_custom_call.1} parent=5 // pred_region
        %s354 = ssub.s32 %s16, 2
        // Predicated region
        $region57: #{tpu_custom_call.1} parent=55 // pred_check
          %p355 = pneg %p113
        $region58: #{tpu_custom_call.1} parent=55 // pred_check_branch
          %357 = sbr.rel (%p355) target = $region60
        $region59: #{tpu_custom_call.1} parent=55 // pred_region
          %p358 = scmp.lt.s32.totalorder %s27, 1
          %s359 = scalar_select %p358, %s27, 1
          %s360 = smul.addr %s359, 4
          %s361 = scalar_lea.vmem %s2, %s360
        $region60: #{tpu_custom_call.1} parent=55 // pred_fallthru
          _
        // Predicated region
        $region61: #{tpu_custom_call.1} parent=55 // pred_check
          %p362 = pneg %p139
        $region62: #{tpu_custom_call.1} parent=55 // pred_check_branch
          %364 = sbr.rel (%p362) target = $region64
        $region63: #{tpu_custom_call.1} parent=55 // pred_region
          %p365 = scmp.lt.s32.totalorder %s27, 1
          %s366 = scalar_select %p365, %s27, 1
          %s367 = smul.addr %s366, 4
          %s368 = scalar_lea.vmem %s3, %s367
        $region64: #{tpu_custom_call.1} parent=55 // pred_fallthru
          _
      $region56: #{tpu_custom_call.1} parent=5 // pred_fallthru
        _
    $region6: #{tpu_custom_call.1} parent=1 // loop_footer
      %s20 = sadd.s32 1, %s16
    $region7: #{tpu_custom_call.1} parent=1 // loop_footer_branch
      %15 = sbr.rel target = $region3
    $region8: #{tpu_custom_call.1} parent=1 // loop_exit
      _
    %369 = vsyncpa [#allocation5], 1
    %s370 = scalar_lea.sflag [#allocation5], 1
    %371 = vsyncpa %s370, 1
    %372 = vsyncpa [#allocation7], 1
    %s373 = scalar_lea.sflag [#allocation7], 1
    %374 = vsyncpa %s373, 1

</llo_original>
